<compile_context>
chip_gen: v7x
topology: tpu7x:2x2x1
jax: 0.10.0
libtpu: 0.0.40
codegen_flags: <defaults>
</compile_context>

<pallas_src>
import functools

import jax
import jax.numpy as jnp
from jax.experimental import pallas as pl
from jax.experimental.pallas import tpu as pltpu


def _residual_kernel(x_ref, w1_ref, b1_ref, w2_ref, b2_ref, out_ref, *, img_h):
    """One grid step = `rows = images_per_step * H` lane-dense rows.

    x_ref   : (rows, W*C_in)  bf16      raw input, channels fastest on lanes
    w1_ref  : (3*W*C_in, W*2*C_out)     fused [conv1a|conv1b] banded weight (bf16)
    b1_ref  : (1, W*2*C_out)            fused BN1a|BN1b shifts (f32)
    w2_ref  : (3*W*2*C_out + W*C_in, W*C_out)
                                        fused conv2a/conv2b (+BN2 scale, +0.5
                                        shake) and 1x1 skip (+BNskip scale) (bf16)
    b2_ref  : (1, W*C_out)              0.5*(shift2a+shift2b) + shift_skip (f32)
    out_ref : (rows, W*C_out) f32       lane-dense output rows
    """
    f32 = jnp.float32
    x_bf = x_ref[...]                       # bf16 straight from HBM
    x = x_bf.astype(f32)
    rows = x.shape[0]

    # Per-image first/last-row masks give the zero halo of 'same' padding and
    # stop the rolls from leaking across images when several are packed.
    r = jax.lax.broadcasted_iota(jnp.int32, (rows, 1), 0) % img_h
    first = r == 0
    last = r == img_h - 1

    def halo(v):
        dn = jnp.where(first, 0.0, pltpu.roll(v, shift=1, axis=0))        # v[h-1]
        up = jnp.where(last, 0.0, pltpu.roll(v, shift=rows - 1, axis=0))  # v[h+1]
        return dn, up

    # --- conv1 of both branches (BN1 scale folded) : ONE matmul, N = W*2*C_out ---
    xr = jnp.maximum(x, 0.0)                                   # ReLU before conv1
    dn, up = halo(xr)
    x1 = jnp.concatenate([dn, xr, up], axis=1).astype(jnp.bfloat16)
    y1 = jnp.dot(x1, w1_ref[...], preferred_element_type=f32) + b1_ref[...]
    h1 = jnp.maximum(y1, 0.0)                                  # BN1 + ReLU

    # --- conv2 of both branches + BN2 + 0.5*(a+b) shake + 1x1 skip : ONE matmul ---
    dn2, up2 = halo(h1)
    x2 = jnp.concatenate([dn2, h1, up2], axis=1).astype(jnp.bfloat16)
    x2 = jnp.concatenate([x2, x_bf], axis=1)                   # raw x -> skip rows of K
    y2 = jnp.dot(x2, w2_ref[...], preferred_element_type=f32)

    out_ref[...] = (y2 + b2_ref[...]).astype(out_ref.dtype)


def _build_fused_params(w1a, w2a, w1b, w2b, wsk, bn_scale, bn_shift, W):
    """Fold BN scales, branch fusion, the eval shake 0.5*(a+b) and the 1x1 skip
    into two banded matmul weights acting on lane-dense (row, W*C) slabs."""
    f32 = jnp.float32
    s1a, s2a, s1b, s2b, ssk = [bn_scale[i, 0] for i in range(5)]
    t1a, t2a, t1b, t2b, tsk = [bn_shift[i, 0] for i in range(5)]
    C_in, C_out = w1a.shape[2], w1a.shape[3]

    def banded(kmat, dx):
        # spatial band: output col w_out reads input col w_in = w_out + dx - 1
        band = jnp.eye(W, W, k=1 - dx, dtype=f32)              # [w_in, w_out]
        m = jnp.einsum('pq,io->piqo', band, kmat)
        return m.reshape(W * kmat.shape[0], W * kmat.shape[1])

    # matmul 1: conv1 of both branches, BN1 scale folded into the weight columns
    m1 = [sum(banded(jnp.concatenate([w1a[dy, dx] * s1a[None, :],
                                      w1b[dy, dx] * s1b[None, :]], axis=1), dx)
              for dx in range(3))
          for dy in range(3)]
    w1 = jnp.concatenate(m1, axis=0)                           # (3*W*C_in, W*2*C_out)
    b1 = jnp.tile(jnp.concatenate([t1a, t1b]), W)[None, :]     # (1, W*2*C_out)

    # matmul 2: conv2 of both branches (BN2 scale + 0.5 shake folded, a+b summed)
    # plus the 1x1 skip conv (BNskip scale folded) appended as extra K rows.
    m2 = [sum(banded(jnp.concatenate([0.5 * w2a[dy, dx] * s2a[None, :],
                                      0.5 * w2b[dy, dx] * s2b[None, :]], axis=0), dx)
              for dx in range(3))
          for dy in range(3)]
    w2_branch = jnp.concatenate(m2, axis=0)                    # (3*W*2*C_out, W*C_out)
    m_skip = banded(wsk * ssk[None, :], 1)                     # (W*C_in,      W*C_out)
    w2 = jnp.concatenate([w2_branch, m_skip], axis=0)
    b2 = jnp.tile(0.5 * (t2a + t2b) + tsk, W)[None, :]         # (1, W*C_out)

    return (w1.astype(jnp.bfloat16), b1.astype(f32),
            w2.astype(jnp.bfloat16), b2.astype(f32))


def _auto_images_per_step(n, h, target_rows=1024):
    """Largest divisor of n whose rows = d*h fits target_rows, preferring
    256-aligned rows (fills the 256-wide MXU on v6e/v7x, 2x128 passes on v5e)."""
    divs = [d for d in range(1, n + 1) if n % d == 0 and d * h <= target_rows]
    if not divs:
        return 1
    aligned = [d for d in divs if (d * h) % 256 == 0]
    return max(aligned) if aligned else max(divs)


def residual_forward(x_nchw, w1a, w2a, w1b, w2b, wsk, bn_scale, bn_shift,
                     *, images_per_step=None):
    N, C_in, H, W = x_nchw.shape
    C_out = w1a.shape[-1]
    if images_per_step is None:
        images_per_step = _auto_images_per_step(N, H)
    assert N % images_per_step == 0

    w1, b1, w2, b2 = _build_fused_params(
        w1a, w2a, w1b, w2b, wsk, bn_scale, bn_shift, W)

    # lane-dense layout, bf16 in HBM (MXU operands are bf16 anyway)
    x_rows = jnp.transpose(x_nchw, (0, 2, 3, 1)).reshape(N * H, W * C_in)
    x_rows = x_rows.astype(jnp.bfloat16)

    rows = images_per_step * H
    grid = (N // images_per_step,)
    kernel = functools.partial(_residual_kernel, img_h=H)

    # Rough per-step VMEM need (double-buffered x/out + intermediates); only
    # raise the scoped limit when huge row blocks are requested.
    vmem_limit = (60 * 1024 * 1024) if rows >= 4096 else None

    out_rows = pl.pallas_call(
        kernel,
        out_shape=jax.ShapeDtypeStruct((N * H, W * C_out), jnp.float32),
        grid_spec=pltpu.PrefetchScalarGridSpec(
            num_scalar_prefetch=0,
            grid=grid,
            in_specs=[
                pl.BlockSpec((rows, W * C_in), lambda i: (i, 0)),
                # constant index_maps: weights/biases are DMA'd once and
                # revisited across all grid steps.
                pl.BlockSpec(w1.shape, lambda i: (0, 0)),
                pl.BlockSpec(b1.shape, lambda i: (0, 0)),
                pl.BlockSpec(w2.shape, lambda i: (0, 0)),
                pl.BlockSpec(b2.shape, lambda i: (0, 0)),
            ],
            out_specs=pl.BlockSpec((rows, W * C_out), lambda i: (i, 0)),
        ),
        compiler_params=pltpu.CompilerParams(
            dimension_semantics=("parallel",),
            vmem_limit_bytes=vmem_limit),
    )(x_rows, w1, b1, w2, b2)

    out = out_rows.reshape(N, H, W, C_out)
    return jnp.transpose(out, (0, 3, 1, 2))


def reference_forward(x_nchw, w1a, w2a, w1b, w2b, wsk, bn_scale, bn_shift):
    """Pure-JAX reference of the same forward pass (correctness check)."""
    x = jnp.transpose(x_nchw, (0, 2, 3, 1)).astype(jnp.float32)
    hi = jax.lax.Precision.HIGHEST

    def conv(h, w, pad):
        return jax.lax.conv_general_dilated(
            h, w, (1, 1), [(pad, pad), (pad, pad)],
            dimension_numbers=("NHWC", "HWIO", "NHWC"), precision=hi)

    def bn(h, i):
        return h * bn_scale[i, 0] + bn_shift[i, 0]

    def branch(w1, w2, i1, i2):
        h = conv(jax.nn.relu(x), w1, 1)
        h = jax.nn.relu(bn(h, i1))
        return bn(conv(h, w2, 1), i2)

    a = branch(w1a, w2a, 0, 1)
    b = branch(w1b, w2b, 2, 3)
    br = 0.5 * (a + b)
    s = bn(conv(x, wsk[None, None], 0), 4)
    return jnp.transpose(br + s, (0, 3, 1, 2))


if __name__ == "__main__":
    key = jax.random.PRNGKey(0)
    N, C_IN, C_OUT, H, W = 2, 4, 8, 16, 16   # channels=4 (in), filters=8 (out), stride=1
    keys = jax.random.split(key, 10)

    def conv_w(k, cout, cin, kh, kw):
        # PyTorch weight layout (O, I, kH, kW), kaiming-like scale, -> HWIO.
        w = jax.random.normal(k, (cout, cin, kh, kw), jnp.float32)
        w = w / jnp.sqrt(float(cin * kh * kw))
        return jnp.transpose(w, (2, 3, 1, 0))

    w1a = conv_w(keys[0], C_OUT, C_IN, 3, 3)
    w2a = conv_w(keys[1], C_OUT, C_OUT, 3, 3)
    w1b = conv_w(keys[2], C_OUT, C_IN, 3, 3)
    w2b = conv_w(keys[3], C_OUT, C_OUT, 3, 3)
    wsk = conv_w(keys[4], C_OUT, C_IN, 1, 1)[0, 0]       # (C_IN, C_OUT)

    def bn_fold(k, c):
        k1, k2, k3, k4 = jax.random.split(k, 4)
        gamma = jax.random.uniform(k1, (c,), jnp.float32, 0.5, 1.5)
        beta = 0.1 * jax.random.normal(k2, (c,), jnp.float32)
        mean = 0.1 * jax.random.normal(k3, (c,), jnp.float32)
        var = jax.random.uniform(k4, (c,), jnp.float32, 0.5, 1.5)
        eps = 1e-5  # BatchNorm2d subclass drops its eps arg -> PyTorch default
        scale = gamma / jnp.sqrt(var + eps)
        shift = beta - mean * scale
        return scale, shift

    folds = [bn_fold(keys[5 + i], C_OUT) for i in range(5)]  # bn1a, bn2a, bn1b, bn2b, bn_skip
    bn_scale = jnp.stack([f[0] for f in folds])[:, None, :]  # (5, 1, C_OUT)
    bn_shift = jnp.stack([f[1] for f in folds])[:, None, :]  # (5, 1, C_OUT)

    x = jax.random.normal(jax.random.PRNGKey(42), (N, C_IN, H, W), jnp.float32)

    # images_per_step auto-picked: folds the whole (small) demo batch into one
    # MXU pass; for realistic N it targets 256-aligned blocks of up to ~1024
    # rows per step while leaving multiple "parallel" grid steps for DMA
    # overlap and both v7x TensorCores.
    out = residual_forward(x, w1a, w2a, w1b, w2b, wsk, bn_scale, bn_shift)
    out = jax.block_until_ready(out)

    ref = reference_forward(x, w1a, w2a, w1b, w2b, wsk, bn_scale, bn_shift)
    assert out.shape == (N, C_OUT, H, W), out.shape
    max_err = float(jnp.max(jnp.abs(out - ref)))
    assert bool(jnp.allclose(out, ref, atol=5e-2, rtol=5e-2)), max_err
    print("KERNEL_OK")
</pallas_src>

<mosaic_0001>
module attributes {stable_mosaic.version = 11 : i64} {
  func.func @_residual_kernel(%arg0: i32, %arg1: memref<32x64xbf16, #tpu.memory_space<vmem>>, %arg2: memref<192x256xbf16, #tpu.memory_space<vmem>>, %arg3: memref<1x256xf32, #tpu.memory_space<vmem>>, %arg4: memref<832x128xbf16, #tpu.memory_space<vmem>>, %arg5: memref<1x128xf32, #tpu.memory_space<vmem>>, %arg6: memref<32x128xf32, #tpu.memory_space<vmem>>) attributes {dimension_semantics = [#tpu.dimension_semantics<parallel>], iteration_bounds = array<i64: 1>, scalar_prefetch = 0 : i64, scratch_operands = 0 : i64, tpu.core_type = #tpu.core_type<tc>, window_params = [{transform_indices = @transform_0, window_bounds = array<i64: 32, 64>}, {pipeline_mode = #tpu.pipeline_mode<synchronous>, transform_indices = @transform_1, window_bounds = array<i64: 192, 256>}, {pipeline_mode = #tpu.pipeline_mode<synchronous>, transform_indices = @transform_2, window_bounds = array<i64: 1, 256>}, {pipeline_mode = #tpu.pipeline_mode<synchronous>, transform_indices = @transform_3, window_bounds = array<i64: 832, 128>}, {pipeline_mode = #tpu.pipeline_mode<synchronous>, transform_indices = @transform_4, window_bounds = array<i64: 1, 128>}, {transform_indices = @transform_5, window_bounds = array<i64: 32, 128>}]} {
    %c0 = arith.constant 0 : index
    %c0_0 = arith.constant 0 : index
    %0 = vector.load %arg1[%c0, %c0_0] : memref<32x64xbf16, #tpu.memory_space<vmem>>, vector<32x64xbf16>
    %1 = arith.extf %0 : vector<32x64xbf16> to vector<32x64xf32>
    %2 = tpu.iota {dimensions = array<i32: 0>} : vector<32x1xi32>
    %c16_i32 = arith.constant 16 : i32
    %c0_i32 = arith.constant 0 : i32
    %3 = arith.cmpi eq, %c16_i32, %c0_i32 : i32
    %c1_i32 = arith.constant 1 : i32
    %4 = arith.select %3, %c1_i32, %c16_i32 : i32
    %5 = vector.broadcast %4 : i32 to vector<32x1xi32>
    %6 = arith.remsi %2, %5 : vector<32x1xi32>
    %c0_i32_1 = arith.constant 0 : i32
    %7 = vector.broadcast %c0_i32_1 : i32 to vector<32x1xi32>
    %8 = arith.cmpi ne, %6, %7 : vector<32x1xi32>
    %c0_i32_2 = arith.constant 0 : i32
    %9 = vector.broadcast %c0_i32_2 : i32 to vector<32x1xi32>
    %10 = arith.cmpi slt, %6, %9 : vector<32x1xi32>
    %c0_i32_3 = arith.constant 0 : i32
    %11 = arith.cmpi slt, %4, %c0_i32_3 : i32
    %12 = vector.broadcast %11 : i1 to vector<32x1xi1>
    %13 = vector.broadcast %12 : vector<32x1xi1> to vector<32x1xi1>
    %14 = arith.xori %10, %13 : vector<32x1xi1>
    %15 = arith.andi %14, %8 : vector<32x1xi1>
    %16 = vector.broadcast %4 : i32 to vector<32x1xi32>
    %17 = arith.addi %6, %16 : vector<32x1xi32>
    %18 = arith.select %15, %17, %6 : vector<32x1xi1>, vector<32x1xi32>
    %c0_i32_4 = arith.constant 0 : i32
    %19 = vector.broadcast %c0_i32_4 : i32 to vector<32x1xi32>
    %20 = arith.cmpi eq, %18, %19 : vector<32x1xi32>
    %c15_i32 = arith.constant 15 : i32
    %21 = vector.broadcast %c15_i32 : i32 to vector<32x1xi32>
    %22 = arith.cmpi eq, %18, %21 : vector<32x1xi32>
    %cst = arith.constant 0.000000e+00 : f32
    %23 = vector.broadcast %cst : f32 to vector<32x64xf32>
    %24 = arith.maximumf %1, %23 : vector<32x64xf32>
    %c1_i32_5 = arith.constant 1 : i32
    %25 = tpu.dynamic_rotate %24 by %c1_i32_5 dim 0 : vector<32x64xf32>, i32 -> vector<32x64xf32>
    %cst_6 = arith.constant 0.000000e+00 : f32
    %26 = vector.shape_cast %20 : vector<32x1xi1> to vector<32x1xi1>
    %27 = vector.broadcast %26 : vector<32x1xi1> to vector<32x64xi1>
    %28 = vector.broadcast %cst_6 : f32 to vector<32x64xf32>
    %29 = arith.select %27, %28, %25 : vector<32x64xi1>, vector<32x64xf32>
    %c31_i32 = arith.constant 31 : i32
    %30 = tpu.dynamic_rotate %24 by %c31_i32 dim 0 : vector<32x64xf32>, i32 -> vector<32x64xf32>
    %cst_7 = arith.constant 0.000000e+00 : f32
    %31 = vector.shape_cast %22 : vector<32x1xi1> to vector<32x1xi1>
    %32 = vector.broadcast %31 : vector<32x1xi1> to vector<32x64xi1>
    %33 = vector.broadcast %cst_7 : f32 to vector<32x64xf32>
    %34 = arith.select %32, %33, %30 : vector<32x64xi1>, vector<32x64xf32>
    %35 = tpu.concatenate %29, %24, %34 in 1 : vector<32x64xf32>, vector<32x64xf32>, vector<32x64xf32> -> vector<32x192xf32>
    %36 = arith.truncf %35 : vector<32x192xf32> to vector<32x192xbf16>
    %c0_8 = arith.constant 0 : index
    %c0_9 = arith.constant 0 : index
    %37 = vector.load %arg2[%c0_8, %c0_9] : memref<192x256xbf16, #tpu.memory_space<vmem>>, vector<192x256xbf16>
    %cst_10 = arith.constant dense<0.000000e+00> : vector<32x256xf32>
    %38 = tpu.matmul %36, %37, %cst_10 {dimension_numbers = #tpu.dot_dimension_numbers<[1], [0], [0], [1], [0, 0, 1, 1], [], []>} : vector<32x192xbf16>, vector<192x256xbf16>, vector<32x256xf32> -> vector<32x256xf32>
    %c0_11 = arith.constant 0 : index
    %c0_12 = arith.constant 0 : index
    %39 = vector.load %arg3[%c0_11, %c0_12] : memref<1x256xf32, #tpu.memory_space<vmem>>, vector<1x256xf32>
    %40 = vector.broadcast %39 : vector<1x256xf32> to vector<32x256xf32>
    %41 = arith.addf %38, %40 : vector<32x256xf32>
    %cst_13 = arith.constant 0.000000e+00 : f32
    %42 = vector.broadcast %cst_13 : f32 to vector<32x256xf32>
    %43 = arith.maximumf %41, %42 : vector<32x256xf32>
    %c1_i32_14 = arith.constant 1 : i32
    %44 = tpu.dynamic_rotate %43 by %c1_i32_14 dim 0 : vector<32x256xf32>, i32 -> vector<32x256xf32>
    %cst_15 = arith.constant 0.000000e+00 : f32
    %45 = vector.shape_cast %20 : vector<32x1xi1> to vector<32x1xi1>
    %46 = vector.broadcast %45 : vector<32x1xi1> to vector<32x256xi1>
    %47 = vector.broadcast %cst_15 : f32 to vector<32x256xf32>
    %48 = arith.select %46, %47, %44 : vector<32x256xi1>, vector<32x256xf32>
    %c31_i32_16 = arith.constant 31 : i32
    %49 = tpu.dynamic_rotate %43 by %c31_i32_16 dim 0 : vector<32x256xf32>, i32 -> vector<32x256xf32>
    %cst_17 = arith.constant 0.000000e+00 : f32
    %50 = vector.shape_cast %22 : vector<32x1xi1> to vector<32x1xi1>
    %51 = vector.broadcast %50 : vector<32x1xi1> to vector<32x256xi1>
    %52 = vector.broadcast %cst_17 : f32 to vector<32x256xf32>
    %53 = arith.select %51, %52, %49 : vector<32x256xi1>, vector<32x256xf32>
    %54 = tpu.concatenate %48, %43, %53 in 1 : vector<32x256xf32>, vector<32x256xf32>, vector<32x256xf32> -> vector<32x768xf32>
    %55 = arith.truncf %54 : vector<32x768xf32> to vector<32x768xbf16>
    %56 = tpu.concatenate %55, %0 in 1 : vector<32x768xbf16>, vector<32x64xbf16> -> vector<32x832xbf16>
    %c0_18 = arith.constant 0 : index
    %c0_19 = arith.constant 0 : index
    %57 = vector.load %arg4[%c0_18, %c0_19] : memref<832x128xbf16, #tpu.memory_space<vmem>>, vector<832x128xbf16>
    %cst_20 = arith.constant dense<0.000000e+00> : vector<32x128xf32>
    %58 = tpu.matmul %56, %57, %cst_20 {dimension_numbers = #tpu.dot_dimension_numbers<[1], [0], [0], [1], [0, 0, 1, 1], [], []>} : vector<32x832xbf16>, vector<832x128xbf16>, vector<32x128xf32> -> vector<32x128xf32>
    %c0_21 = arith.constant 0 : index
    %c0_22 = arith.constant 0 : index
    %59 = vector.load %arg5[%c0_21, %c0_22] : memref<1x128xf32, #tpu.memory_space<vmem>>, vector<1x128xf32>
    %60 = vector.broadcast %59 : vector<1x128xf32> to vector<32x128xf32>
    %61 = arith.addf %58, %60 : vector<32x128xf32>
    %c0_23 = arith.constant 0 : index
    %c0_24 = arith.constant 0 : index
    %62 = vector.load %arg6[%c0_23, %c0_24] : memref<32x128xf32, #tpu.memory_space<vmem>>, vector<32x128xf32>
    tpu.vector_store %arg6[%c0_23, %c0_24], %61 {strides = array<i32>} : memref<32x128xf32, #tpu.memory_space<vmem>>, vector<32x128xf32>,
    return
  }
  func.func @transform_0(%arg0: i32) -> (i32, i32) {
    %c0_i32 = arith.constant 0 : i32
    %c0_i32_0 = arith.constant 0 : i32
    return %arg0, %c0_i32 : i32, i32
  }
  func.func @transform_1(%arg0: i32) -> (i32, i32) {
    %c0_i32 = arith.constant 0 : i32
    %c0_i32_0 = arith.constant 0 : i32
    %c0_i32_1 = arith.constant 0 : i32
    return %c0_i32, %c0_i32_0 : i32, i32
  }
  func.func @transform_2(%arg0: i32) -> (i32, i32) {
    %c0_i32 = arith.constant 0 : i32
    %c0_i32_0 = arith.constant 0 : i32
    %c0_i32_1 = arith.constant 0 : i32
    return %c0_i32, %c0_i32_0 : i32, i32
  }
  func.func @transform_3(%arg0: i32) -> (i32, i32) {
    %c0_i32 = arith.constant 0 : i32
    %c0_i32_0 = arith.constant 0 : i32
    %c0_i32_1 = arith.constant 0 : i32
    return %c0_i32, %c0_i32_0 : i32, i32
  }
  func.func @transform_4(%arg0: i32) -> (i32, i32) {
    %c0_i32 = arith.constant 0 : i32
    %c0_i32_0 = arith.constant 0 : i32
    %c0_i32_1 = arith.constant 0 : i32
    return %c0_i32, %c0_i32_0 : i32, i32
  }
  func.func @transform_5(%arg0: i32) -> (i32, i32) {
    %c0_i32 = arith.constant 0 : i32
    %c0_i32_0 = arith.constant 0 : i32
    return %arg0, %c0_i32 : i32, i32
  }
}

</mosaic_0001>

<llo_original>
// kernel: tpu_custom_call.1
$region0: #{tpu_custom_call.1}
  #allocation0 [shape = 'u32[]', space=smem, size = 0x4, offset = 0x4, fixed_abs, tag = 'smem constant byte address 0x4 - core index']
  #allocation1 [shape = 'u32[144,128]{1,0:T(1,128)}', space=vmem, size = 0x12000, scoped, tag = 'internal scratch']
  %s0 = inlined_call_operand.hbm [shape: bf16[32,64], index: 0, kind: input, shape index: {}]
  %s1 = inlined_call_operand.hbm [shape: bf16[192,256], index: 1, kind: input, shape index: {}]
  %s2 = inlined_call_operand.vmem [shape: f32[1,256], index: 2, kind: input, shape index: {}]
  %s3 = inlined_call_operand.hbm [shape: bf16[832,128], index: 3, kind: input, shape index: {}]
  %s4 = inlined_call_operand.vmem [shape: f32[1,128], index: 4, kind: input, shape index: {}]
  %s5 = inlined_call_operand.hbm [shape: f32[32,128], index: 5, kind: output, shape index: {}]
  %s6 = sld [smem:[#allocation0]]
  $region42: #{tpu_custom_call.1} parent=0
    _
  %s8 = ssub.s32 1, %s6
  %s9 = scalar_select 0, %s8, %s6
  $region1: #{tpu_custom_call.1} parent=0
    #allocation2 [shape = 'u8[8192]{0}', space=vmem, size = 0x2000, scoped, tag = 'input window, operand 0, single buffered']
    #allocation3 [shape = 's32[1]{0}', space=sflag, size = 0x4, scoped, tag = 'scoped memory for tpu_custom_call.1']
    #allocation4 [shape = 's32[1]{0}', space=sflag, size = 0x4, scoped, tag = 'scoped memory for tpu_custom_call.1']
    #allocation5 [shape = 'u8[98304]{0}', space=vmem, size = 0x18000, scoped, tag = 'input window, operand 1, single buffered']
    #allocation6 [shape = 's32[1]{0}', space=sflag, size = 0x4, scoped, tag = 'scoped memory for tpu_custom_call.1']
    #allocation7 [shape = 'u8[212992]{0}', space=vmem, size = 0x34000, scoped, tag = 'input window, operand 3, single buffered']
    #allocation8 [shape = 'u8[16384]{0}', space=vmem, size = 0x4000, scoped, tag = 'output window, operand 0, single buffered']
    %10 = vsyncpa [#allocation3], 0
    %11 = vsyncpa [#allocation6], 0
    %12 = vsyncpa [#allocation4], 0
    // Predicated region
    $region2: #{tpu_custom_call.1} parent=1 // pred_check
      _
    $region3: #{tpu_custom_call.1} parent=1 // pred_check_branch
      %14 = sbr.rel (0) target = $region5
    $region4: #{tpu_custom_call.1} parent=1 // pred_region
      %s16 = ssub.s32 256, 256
      %17 = vsyncadd [#allocation3], %s16
      %s18 = sshll.u32 [#allocation2], 4
      %s19 = int_to_ptr.vmem [resolvable:$true] %s18
      %24 = dma.hbm_to_vmem [thread:$0]  %s0, 256, %s19, [#allocation3], 64, 64, 4
    $region5: #{tpu_custom_call.1} parent=1 // pred_fallthru
      _
    // Predicated region
    $region6: #{tpu_custom_call.1} parent=1 // pred_check
      _
    $region7: #{tpu_custom_call.1} parent=1 // pred_check_branch
      %26 = sbr.rel (0) target = $region9
    $region8: #{tpu_custom_call.1} parent=1 // pred_region
      %s28 = ssub.s32 3072, 3072
      %29 = vsyncadd [#allocation6], %s28
      %s30 = sshll.u32 [#allocation5], 4
      %s31 = int_to_ptr.vmem [resolvable:$true] %s30
      %36 = dma.hbm_to_vmem [thread:$0]  %s1, 3072, %s31, [#allocation6], 128, 128, 8
    $region9: #{tpu_custom_call.1} parent=1 // pred_fallthru
      _
    // Predicated region
    $region10: #{tpu_custom_call.1} parent=1 // pred_check
      _
    $region11: #{tpu_custom_call.1} parent=1 // pred_check_branch
      %38 = sbr.rel (0) target = $region13
    $region12: #{tpu_custom_call.1} parent=1 // pred_region
      _
    $region13: #{tpu_custom_call.1} parent=1 // pred_fallthru
      _
    // Predicated region
    $region14: #{tpu_custom_call.1} parent=1 // pred_check
      _
    $region15: #{tpu_custom_call.1} parent=1 // pred_check_branch
      %40 = sbr.rel (0) target = $region17
    $region16: #{tpu_custom_call.1} parent=1 // pred_region
      %s42 = ssub.s32 6656, 6656
      %43 = vsyncadd [#allocation6], %s42
      %s44 = sshll.u32 [#allocation7], 4
      %s45 = int_to_ptr.vmem [resolvable:$true] %s44
      %50 = dma.hbm_to_vmem [thread:$0]  %s3, 6656, %s45, [#allocation6], 64, 64, 4
    $region17: #{tpu_custom_call.1} parent=1 // pred_fallthru
      _
    // Predicated region
    $region18: #{tpu_custom_call.1} parent=1 // pred_check
      _
    $region19: #{tpu_custom_call.1} parent=1 // pred_check_branch
      %52 = sbr.rel (0) target = $region21
    $region20: #{tpu_custom_call.1} parent=1 // pred_region
      _
    $region21: #{tpu_custom_call.1} parent=1 // pred_fallthru
      _
    // Predicated region
    $region22: #{tpu_custom_call.1} parent=1 // pred_check
      _
    $region23: #{tpu_custom_call.1} parent=1 // pred_check_branch
      %54 = sbr.rel (0) target = $region25
    $region24: #{tpu_custom_call.1} parent=1 // pred_region
      %55 = dma.done [#allocation3], 256
    $region25: #{tpu_custom_call.1} parent=1 // pred_fallthru
      _
    // Predicated region
    $region26: #{tpu_custom_call.1} parent=1 // pred_check
      _
    $region27: #{tpu_custom_call.1} parent=1 // pred_check_branch
      %57 = sbr.rel (0) target = $region29
    $region28: #{tpu_custom_call.1} parent=1 // pred_region
      %58 = dma.done [#allocation6], 3072
    $region29: #{tpu_custom_call.1} parent=1 // pred_fallthru
      _
    // Predicated region
    $region30: #{tpu_custom_call.1} parent=1 // pred_check
      _
    $region31: #{tpu_custom_call.1} parent=1 // pred_check_branch
      %60 = sbr.rel (0) target = $region33
    $region32: #{tpu_custom_call.1} parent=1 // pred_region
      %61 = dma.done [#allocation6], 6656
    $region33: #{tpu_custom_call.1} parent=1 // pred_fallthru
      _
    %v63 = vld [vmem:[#allocation2] sm:$0xf]
    %v64 = vld [vmem:[#allocation2 + $0x4] sm:$0xf]
    %v65 = vld [vmem:[#allocation2 + $0x8] sm:$0xf]
    %v66 = vld [vmem:[#allocation2 + $0xc] sm:$0xf]
    %v67 = vunpack.c.l.bf16 %v63
    %v68 = vunpack.c.l.bf16 %v64
    %v69 = vunpack.c.l.bf16 %v65
    %v70 = vunpack.c.l.bf16 %v66
    %v71 = vlaneseq
    %v72 = vshrl.u32 %v71, 7
    %v73 = vadd.s32 %v72, 8
    %v74 = vadd.s32 %v72, 16
    %v75 = vadd.s32 %v72, 24
    %vm76 = vcmp.lt.s32.totalorder %v72, 0
    %v77 = vsub.s32 0, %v72
    %v78 = vsel %vm76, %v77, %v72
    %v79 = vshrl.u32 %v78, 4
    %v80 = vand.u32 %v78, 15
    %v81 = vsub.s32 0, %v80
    %v82 = vsel %vm76, %v81, %v80
    %vm83 = vcmp.lt.s32.totalorder %v73, 0
    %v84 = vsub.s32 0, %v73
    %v85 = vsel %vm83, %v84, %v73
    %v86 = vshrl.u32 %v85, 4
    %v87 = vand.u32 %v85, 15
    %v88 = vsub.s32 0, %v87
    %v89 = vsel %vm83, %v88, %v87
    %vm90 = vcmp.lt.s32.totalorder %v74, 0
    %v91 = vsub.s32 0, %v74
    %v92 = vsel %vm90, %v91, %v74
    %v93 = vshrl.u32 %v92, 4
    %v94 = vand.u32 %v92, 15
    %v95 = vsub.s32 0, %v94
    %v96 = vsel %vm90, %v95, %v94
    %vm97 = vcmp.lt.s32.totalorder %v75, 0
    %v98 = vsub.s32 0, %v75
    %v99 = vsel %vm97, %v98, %v75
    %v100 = vshrl.u32 %v99, 4
    %v101 = vand.u32 %v99, 15
    %v102 = vsub.s32 0, %v101
    %v103 = vsel %vm97, %v102, %v101
    %vm104 = vcmp.ne.s32.totalorder %v82, 0
    %vm105 = vcmp.ne.s32.totalorder %v89, 0
    %vm106 = vcmp.ne.s32.totalorder %v96, 0
    %vm107 = vcmp.ne.s32.totalorder %v103, 0
    %vm108 = vcmp.lt.s32.totalorder %v82, 0
    %vm109 = vcmp.lt.s32.totalorder %v89, 0
    %vm110 = vcmp.lt.s32.totalorder %v96, 0
    %vm111 = vcmp.lt.s32.totalorder %v103, 0
    %vm112 = vmand %vm108, %vm104
    %vm113 = vmand %vm109, %vm105
    %vm114 = vmand %vm110, %vm106
    %vm115 = vmand %vm111, %vm107
    %v116 = vadd.s32 %v82, 16
    %v117 = vadd.s32 %v89, 16
    %v118 = vadd.s32 %v96, 16
    %v119 = vadd.s32 %v103, 16
    %v120 = vsel %vm112, %v116, %v82
    %v121 = vsel %vm113, %v117, %v89
    %v122 = vsel %vm114, %v118, %v96
    %v123 = vsel %vm115, %v119, %v103
    %vm124 = vcmp.eq.s32.totalorder %v120, 0
    %vm125 = vcmp.eq.s32.totalorder %v121, 0
    %vm126 = vcmp.eq.s32.totalorder %v122, 0
    %vm127 = vcmp.eq.s32.totalorder %v123, 0
    %vm128 = vcmp.eq.s32.totalorder %v120, 15
    %vm129 = vcmp.eq.s32.totalorder %v121, 15
    %vm130 = vcmp.eq.s32.totalorder %v122, 15
    %vm131 = vcmp.eq.s32.totalorder %v123, 15
    %v132 = vmax.f32 %v67, 0.0
    %v133 = vmax.f32 %v68, 0.0
    %v134 = vmax.f32 %v69, 0.0
    %v135 = vmax.f32 %v70, 0.0
    %v136 = vrot.slane %v132, 7
    %v137 = vrot.slane %v133, 7
    %v138 = vrot.slane %v134, 7
    %v139 = vrot.slane %v135, 7
    %vm140 = vcmp.lt.s32.totalorder %v72, 1
    %v141 = vsel %vm140, %v138, %v139
    %v142 = vsel %vm140, %v137, %v138
    %v143 = vsel %vm140, %v136, %v137
    %v144 = vsel %vm140, %v139, %v136
    %v145 = vsel %vm124, 1, 0
    %v146 = vsel %vm125, 1, 0
    %v147 = vsel %vm126, 1, 0
    %v148 = vsel %vm127, 1, 0
    %vm149 = vcmp.eq.s32.totalorder %v145, 1
    %vm150 = vcmp.eq.s32.totalorder %v146, 1
    %vm151 = vcmp.eq.s32.totalorder %v147, 1
    %vm152 = vcmp.eq.s32.totalorder %v148, 1
    %v153 = vsel %vm149, 0.0, %v144
    %v154 = vsel %vm150, 0.0, %v143
    %v155 = vsel %vm151, 0.0, %v142
    %v156 = vsel %vm152, 0.0, %v141
    %v157 = vrot.slane %v132, 1
    %v158 = vrot.slane %v133, 1
    %v159 = vrot.slane %v134, 1
    %v160 = vrot.slane %v135, 1
    %vm161 = vcmp.lt.s32.totalorder %v72, 7
    %v162 = vsel %vm161, %v159, %v160
    %v163 = vsel %vm161, %v158, %v159
    %v164 = vsel %vm161, %v157, %v158
    %v165 = vsel %vm161, %v160, %v157
    %v166 = vsel %vm128, 1, 0
    %v167 = vsel %vm129, 1, 0
    %v168 = vsel %vm130, 1, 0
    %v169 = vsel %vm131, 1, 0
    %vm170 = vcmp.eq.s32.totalorder %v166, 1
    %vm171 = vcmp.eq.s32.totalorder %v167, 1
    %vm172 = vcmp.eq.s32.totalorder %v168, 1
    %vm173 = vcmp.eq.s32.totalorder %v169, 1
    %v174 = vsel %vm170, 0.0, %v164
    %v175 = vsel %vm171, 0.0, %v163
    %v176 = vsel %vm172, 0.0, %v162
    %v177 = vsel %vm173, 0.0, %v165
    %182 = vrot.lane.b32.xlu0 %v132, 64
    %v183 = vpop.permute.xlu0 %182
    %184 = vrot.lane.b32.xlu0 %v133, 64
    %v185 = vpop.permute.xlu0 %184
    %186 = vrot.lane.b32.xlu0 %v134, 64
    %v187 = vpop.permute.xlu0 %186
    %188 = vrot.lane.b32.xlu0 %v135, 64
    %v189 = vpop.permute.xlu0 %188
    %vm194 = vcmask 523264
    %v195 = vsel %vm194, %v153, %v183
    %v196 = vsel %vm194, %v154, %v185
    %v197 = vsel %vm194, %v155, %v187
    %v198 = vsel %vm194, %v156, %v189
    %v199 = vpack.c.bf16 %v196, %v195
    %v200 = vpack.c.bf16 %v175, %v174
    %v201 = vpack.c.bf16 %v198, %v197
    %v202 = vpack.c.bf16 %v177, %v176
    %v203 = vld [vmem:[#allocation5] sm:$0xff]
    %v204 = vld [vmem:[#allocation5 + $0x8] sm:$0xff]
    %v205 = vld [vmem:[#allocation5 + $0x10] sm:$0xff]
    %v206 = vld [vmem:[#allocation5 + $0x18] sm:$0xff]
    %v207 = vld [vmem:[#allocation5 + $0x20] sm:$0xff]
    %v208 = vld [vmem:[#allocation5 + $0x28] sm:$0xff]
    %v209 = vld [vmem:[#allocation5 + $0x30] sm:$0xff]
    %v210 = vld [vmem:[#allocation5 + $0x38] sm:$0xff]
    %v211 = vld [vmem:[#allocation5 + $0x40] sm:$0xff]
    %v212 = vld [vmem:[#allocation5 + $0x48] sm:$0xff]
    %v213 = vld [vmem:[#allocation5 + $0x50] sm:$0xff]
    %v214 = vld [vmem:[#allocation5 + $0x58] sm:$0xff]
    %v215 = vld [vmem:[#allocation5 + $0x60] sm:$0xff]
    %v216 = vld [vmem:[#allocation5 + $0x68] sm:$0xff]
    %v217 = vld [vmem:[#allocation5 + $0x70] sm:$0xff]
    %v218 = vld [vmem:[#allocation5 + $0x78] sm:$0xff]
    %v219 = vld [vmem:[#allocation5 + $0x80] sm:$0xff]
    %v220 = vld [vmem:[#allocation5 + $0x88] sm:$0xff]
    %v221 = vld [vmem:[#allocation5 + $0x90] sm:$0xff]
    %v222 = vld [vmem:[#allocation5 + $0x98] sm:$0xff]
    %v223 = vld [vmem:[#allocation5 + $0xa0] sm:$0xff]
    %v224 = vld [vmem:[#allocation5 + $0xa8] sm:$0xff]
    %v225 = vld [vmem:[#allocation5 + $0xb0] sm:$0xff]
    %v226 = vld [vmem:[#allocation5 + $0xb8] sm:$0xff]
    %v227 = vld [vmem:[%s2] sm:$0x3]
    %v229 = vlaneseq
    %v230 = vshrl.u32 %v229, 7
    %v231 = vsub.s32 0, %v230
    %v232 = vrot.slane %v227, %v231
    %v233 = vlaneseq
    %v234 = vshrl.u32 %v233, 7
    %v235 = vsub.s32 1, %v234
    %v236 = vrot.slane %v227, %v235
    %v263 = vunpack.c.l.b16 %v203
    %v264 = vunpack.c.h.b16 %v203
    %v265 = vunpack.c.l.b16 %v204
    %v266 = vunpack.c.h.b16 %v204
    %v267 = vunpack.c.l.b16 %v205
    %v268 = vunpack.c.h.b16 %v205
    %v269 = vunpack.c.l.b16 %v206
    %v270 = vunpack.c.h.b16 %v206
    %v271 = vunpack.c.l.b16 %v207
    %v272 = vunpack.c.h.b16 %v207
    %v273 = vunpack.c.l.b16 %v208
    %v274 = vunpack.c.h.b16 %v208
    %v275 = vunpack.c.l.b16 %v209
    %v276 = vunpack.c.h.b16 %v209
    %v277 = vunpack.c.l.b16 %v210
    %v278 = vunpack.c.h.b16 %v210
    %v279 = vunpack.c.l.b16 %v211
    %v280 = vunpack.c.h.b16 %v211
    %v281 = vunpack.c.l.b16 %v212
    %v282 = vunpack.c.h.b16 %v212
    %v283 = vunpack.c.l.b16 %v213
    %v284 = vunpack.c.h.b16 %v213
    %v285 = vunpack.c.l.b16 %v214
    %v286 = vunpack.c.h.b16 %v214
    %v287 = vunpack.c.l.b16 %v215
    %v288 = vunpack.c.h.b16 %v215
    %v289 = vunpack.c.l.b16 %v216
    %v290 = vunpack.c.h.b16 %v216
    %v291 = vunpack.c.l.b16 %v217
    %v292 = vunpack.c.h.b16 %v217
    %v293 = vunpack.c.l.b16 %v218
    %v294 = vunpack.c.h.b16 %v218
    %v295 = vunpack.c.l.b16 %v219
    %v296 = vunpack.c.h.b16 %v219
    %v297 = vunpack.c.l.b16 %v220
    %v298 = vunpack.c.h.b16 %v220
    %v299 = vunpack.c.l.b16 %v221
    %v300 = vunpack.c.h.b16 %v221
    %v301 = vunpack.c.l.b16 %v222
    %v302 = vunpack.c.h.b16 %v222
    %v303 = vunpack.c.l.b16 %v223
    %v304 = vunpack.c.h.b16 %v223
    %v305 = vunpack.c.l.b16 %v224
    %v306 = vunpack.c.h.b16 %v224
    %v307 = vunpack.c.l.b16 %v225
    %v308 = vunpack.c.h.b16 %v225
    %v309 = vunpack.c.l.b16 %v226
    %v310 = vunpack.c.h.b16 %v226
    %v311 = vpack.c.b16 %v265, %v263
    %v312 = vpack.c.b16 %v266, %v264
    %v313 = vpack.c.b16 %v269, %v267
    %v314 = vpack.c.b16 %v270, %v268
    %v315 = vpack.c.b16 %v273, %v271
    %v316 = vpack.c.b16 %v274, %v272
    %v317 = vpack.c.b16 %v277, %v275
    %v318 = vpack.c.b16 %v278, %v276
    %v319 = vpack.c.b16 %v281, %v279
    %v320 = vpack.c.b16 %v282, %v280
    %v321 = vpack.c.b16 %v285, %v283
    %v322 = vpack.c.b16 %v286, %v284
    %v323 = vpack.c.b16 %v289, %v287
    %v324 = vpack.c.b16 %v290, %v288
    %v325 = vpack.c.b16 %v293, %v291
    %v326 = vpack.c.b16 %v294, %v292
    %v327 = vpack.c.b16 %v297, %v295
    %v328 = vpack.c.b16 %v298, %v296
    %v329 = vpack.c.b16 %v301, %v299
    %v330 = vpack.c.b16 %v302, %v300
    %v331 = vpack.c.b16 %v305, %v303
    %v332 = vpack.c.b16 %v306, %v304
    %v333 = vpack.c.b16 %v309, %v307
    %v334 = vpack.c.b16 %v310, %v308
    %v360 = vsel %vm194, %v200, 0
    %v363 = vsel %vm194, %v202, 0
    %365 = vmatprep.subr.bf16.mxu0 %v312
    %366 = vmatpush1.bf16.msra.mxu0 %v311
    %367 = vmatprep.subr.bf16.mxu0 %v314
    %368 = vmatpush1.bf16.msra.mxu0 %v313
    %369 = vmatprep.subr.bf16.mxu0 %v316
    %370 = vmatpush1.bf16.msra.mxu0 %v315
    %371 = vmatprep.subr.bf16.mxu0 %v318
    %372 = vmatpush1.bf16.msra.mxu0 %v317
    %373 = vmatprep.subr.bf16.mxu0 %v320
    %374 = vmatpush1.bf16.msra.mxu0 %v319
    %375 = vmatprep.subr.bf16.mxu0 %v322
    %376 = vmatpush1.bf16.msra.mxu0 %v321
    %377 = vmatprep.subr.bf16.mxu0 %v324
    %378 = vmatpush1.bf16.msra.mxu0 %v323
    %379 = vmatprep.subr.bf16.mxu0 %v326
    %380 = vmatpush1.bf16.msra.mxu0 %v325
    %381 = vmatprep.subr.bf16.mxu0 %v328
    %382 = vmatpush1.bf16.msra.mxu0 %v327
    %383 = vmatprep.subr.bf16.mxu0 %v330
    %384 = vmatpush1.bf16.msra.mxu0 %v329
    %385 = vmatprep.subr.bf16.mxu0 %v332
    %386 = vmatpush1.bf16.msra.mxu0 %v331
    %387 = vmatprep.subr.bf16.mxu0 %v334
    %388 = vmatpush1.bf16.msra.mxu0 %v333
    %389 = vmatprep.subr.bf16.mxu0 0
    %390 = vmatpush1.bf16.msra.mxu0 0
    %391 = vmatprep.subr.bf16.mxu0 0
    %392 = vmatpush1.bf16.msra.mxu0 0
    %393 = vmatprep.subr.bf16.mxu0 0
    %394 = vmatpush1.bf16.msra.mxu0 0
    %395 = vmatprep.subr.bf16.mxu0 0
    %396 = vmatpush1.bf16.msra.mxu0 0
    %397 = vmatprep.mubr.bf16.mxu0 %v360
    %398 = vmatmul.mubr.bf16.gmra.mrb[0].mxu0 %v199
    %v399 = vpop.f32.mrb[0].mxu0
    %v400 = vadd.f32 %v232, %v399
    %v401 = vpop.f32.mrb[0].mxu0
    %v402 = vadd.f32 %v236, %v401
    %v403 = vpop.f32.mrb[0].mxu0
    %v404 = vadd.f32 %v232, %v403
    %v405 = vpop.f32.mrb[0].mxu0
    %v406 = vadd.f32 %v236, %v405
    %407 = vmatprep.mubr.bf16.mxu0 %v363
    %408 = vmatmul.mubr.bf16.gmra.mrb[0].mxu0 %v201
    %v409 = vpop.f32.mrb[0].mxu0
    %v410 = vadd.f32 %v232, %v409
    %v411 = vpop.f32.mrb[0].mxu0
    %v412 = vadd.f32 %v236, %v411
    %v413 = vpop.f32.mrb[0].mxu0
    %v414 = vadd.f32 %v232, %v413
    %v415 = vpop.f32.mrb[0].mxu0
    %v416 = vadd.f32 %v236, %v415
    %417 = vdwg.mxu0
    %v418 = vmax.f32 %v400, 0.0
    %v419 = vmax.f32 %v402, 0.0
    %v420 = vmax.f32 %v404, 0.0
    %v421 = vmax.f32 %v406, 0.0
    %v422 = vmax.f32 %v410, 0.0
    %v423 = vmax.f32 %v412, 0.0
    %v424 = vmax.f32 %v414, 0.0
    %v425 = vmax.f32 %v416, 0.0
    %v426 = vrot.slane %v418, 7
    %v427 = vrot.slane %v419, 7
    %v428 = vrot.slane %v420, 7
    %v429 = vrot.slane %v421, 7
    %v430 = vrot.slane %v422, 7
    %v431 = vrot.slane %v423, 7
    %v432 = vrot.slane %v424, 7
    %v433 = vrot.slane %v425, 7
    %v434 = vsel %vm140, %v430, %v432
    %v435 = vsel %vm140, %v431, %v433
    %v436 = vsel %vm140, %v428, %v430
    %v437 = vsel %vm140, %v429, %v431
    %v438 = vsel %vm140, %v426, %v428
    %v439 = vsel %vm140, %v427, %v429
    %v440 = vsel %vm140, %v432, %v426
    %v441 = vsel %vm140, %v433, %v427
    %v442 = vsel %vm149, 0.0, %v440
    %v443 = vsel %vm149, 0.0, %v441
    %v444 = vsel %vm150, 0.0, %v438
    %v445 = vsel %vm150, 0.0, %v439
    %v446 = vsel %vm151, 0.0, %v436
    %v447 = vsel %vm151, 0.0, %v437
    %v448 = vsel %vm152, 0.0, %v434
    %v449 = vsel %vm152, 0.0, %v435
    %v450 = vrot.slane %v418, 1
    %v451 = vrot.slane %v419, 1
    %v452 = vrot.slane %v420, 1
    %v453 = vrot.slane %v421, 1
    %v454 = vrot.slane %v422, 1
    %v455 = vrot.slane %v423, 1
    %v456 = vrot.slane %v424, 1
    %v457 = vrot.slane %v425, 1
    %v458 = vsel %vm161, %v454, %v456
    %v459 = vsel %vm161, %v455, %v457
    %v460 = vsel %vm161, %v452, %v454
    %v461 = vsel %vm161, %v453, %v455
    %v462 = vsel %vm161, %v450, %v452
    %v463 = vsel %vm161, %v451, %v453
    %v464 = vsel %vm161, %v456, %v450
    %v465 = vsel %vm161, %v457, %v451
    %v466 = vsel %vm170, 0.0, %v462
    %v467 = vsel %vm170, 0.0, %v463
    %v468 = vsel %vm171, 0.0, %v460
    %v469 = vsel %vm171, 0.0, %v461
    %v470 = vsel %vm172, 0.0, %v458
    %v471 = vsel %vm172, 0.0, %v459
    %v472 = vsel %vm173, 0.0, %v464
    %v473 = vsel %vm173, 0.0, %v465
    %v474 = vpack.c.bf16 %v444, %v442
    %v475 = vpack.c.bf16 %v445, %v443
    %v476 = vpack.c.bf16 %v420, %v418
    %v477 = vpack.c.bf16 %v421, %v419
    %v478 = vpack.c.bf16 %v468, %v466
    %v479 = vpack.c.bf16 %v469, %v467
    %v480 = vpack.c.bf16 %v448, %v446
    %v481 = vpack.c.bf16 %v449, %v447
    %v482 = vpack.c.bf16 %v424, %v422
    %v483 = vpack.c.bf16 %v425, %v423
    %v484 = vpack.c.bf16 %v472, %v470
    %v485 = vpack.c.bf16 %v473, %v471
    %v490 = vunpack.c.l.b16 %v63
    %v491 = vunpack.c.l.b16 %v64
    %v492 = vunpack.c.l.b16 %v65
    %v493 = vunpack.c.l.b16 %v66
    %v494 = vpack.c.b16 %v491, %v490
    %v495 = vpack.c.b16 %v493, %v492
    %v496 = vld [vmem:[#allocation7] sm:$0xf]
    %v497 = vld [vmem:[#allocation7 + $0x4] sm:$0xf]
    %v498 = vld [vmem:[#allocation7 + $0x8] sm:$0xf]
    %v499 = vld [vmem:[#allocation7 + $0xc] sm:$0xf]
    %v500 = vld [vmem:[#allocation7 + $0x10] sm:$0xf]
    %v501 = vld [vmem:[#allocation7 + $0x14] sm:$0xf]
    %v502 = vld [vmem:[#allocation7 + $0x18] sm:$0xf]
    %v503 = vld [vmem:[#allocation7 + $0x1c] sm:$0xf]
    %v504 = vld [vmem:[#allocation7 + $0x20] sm:$0xf]
    %v505 = vld [vmem:[#allocation7 + $0x24] sm:$0xf]
    %v506 = vld [vmem:[#allocation7 + $0x28] sm:$0xf]
    %v507 = vld [vmem:[#allocation7 + $0x2c] sm:$0xf]
    %v508 = vld [vmem:[#allocation7 + $0x30] sm:$0xf]
    %v509 = vld [vmem:[#allocation7 + $0x34] sm:$0xf]
    %v510 = vld [vmem:[#allocation7 + $0x38] sm:$0xf]
    %v511 = vld [vmem:[#allocation7 + $0x3c] sm:$0xf]
    %v512 = vld [vmem:[#allocation7 + $0x40] sm:$0xf]
    %v513 = vld [vmem:[#allocation7 + $0x44] sm:$0xf]
    %v514 = vld [vmem:[#allocation7 + $0x48] sm:$0xf]
    %v515 = vld [vmem:[#allocation7 + $0x4c] sm:$0xf]
    %v516 = vld [vmem:[#allocation7 + $0x50] sm:$0xf]
    %v517 = vld [vmem:[#allocation7 + $0x54] sm:$0xf]
    %v518 = vld [vmem:[#allocation7 + $0x58] sm:$0xf]
    %v519 = vld [vmem:[#allocation7 + $0x5c] sm:$0xf]
    %v520 = vld [vmem:[#allocation7 + $0x60] sm:$0xf]
    %v521 = vld [vmem:[#allocation7 + $0x64] sm:$0xf]
    %v522 = vld [vmem:[#allocation7 + $0x68] sm:$0xf]
    %v523 = vld [vmem:[#allocation7 + $0x6c] sm:$0xf]
    %v524 = vld [vmem:[#allocation7 + $0x70] sm:$0xf]
    %v525 = vld [vmem:[#allocation7 + $0x74] sm:$0xf]
    %v526 = vld [vmem:[#allocation7 + $0x78] sm:$0xf]
    %v527 = vld [vmem:[#allocation7 + $0x7c] sm:$0xf]
    %v528 = vld [vmem:[#allocation7 + $0x80] sm:$0xf]
    %v529 = vld [vmem:[#allocation7 + $0x84] sm:$0xf]
    %v530 = vld [vmem:[#allocation7 + $0x88] sm:$0xf]
    %v531 = vld [vmem:[#allocation7 + $0x8c] sm:$0xf]
    %v532 = vld [vmem:[#allocation7 + $0x90] sm:$0xf]
    %v533 = vld [vmem:[#allocation7 + $0x94] sm:$0xf]
    %v534 = vld [vmem:[#allocation7 + $0x98] sm:$0xf]
    %v535 = vld [vmem:[#allocation7 + $0x9c] sm:$0xf]
    %v536 = vld [vmem:[#allocation7 + $0xa0] sm:$0xf]
    %v537 = vld [vmem:[#allocation7 + $0xa4] sm:$0xf]
    %v538 = vld [vmem:[#allocation7 + $0xa8] sm:$0xf]
    %v539 = vld [vmem:[#allocation7 + $0xac] sm:$0xf]
    %v540 = vld [vmem:[#allocation7 + $0xb0] sm:$0xf]
    %v541 = vld [vmem:[#allocation7 + $0xb4] sm:$0xf]
    %v542 = vld [vmem:[#allocation7 + $0xb8] sm:$0xf]
    %v543 = vld [vmem:[#allocation7 + $0xbc] sm:$0xf]
    %v544 = vld [vmem:[#allocation7 + $0xc0] sm:$0xf]
    %v545 = vld [vmem:[#allocation7 + $0xc4] sm:$0xf]
    %v546 = vld [vmem:[#allocation7 + $0xc8] sm:$0xf]
    %v547 = vld [vmem:[#allocation7 + $0xcc] sm:$0xf]
    %v548 = vld [vmem:[#allocation7 + $0xd0] sm:$0xf]
    %v549 = vld [vmem:[#allocation7 + $0xd4] sm:$0xf]
    %v550 = vld [vmem:[#allocation7 + $0xd8] sm:$0xf]
    %v551 = vld [vmem:[#allocation7 + $0xdc] sm:$0xf]
    %v552 = vld [vmem:[#allocation7 + $0xe0] sm:$0xf]
    %v553 = vld [vmem:[#allocation7 + $0xe4] sm:$0xf]
    %v554 = vld [vmem:[#allocation7 + $0xe8] sm:$0xf]
    %v555 = vld [vmem:[#allocation7 + $0xec] sm:$0xf]
    %v556 = vld [vmem:[#allocation7 + $0xf0] sm:$0xf]
    %v557 = vld [vmem:[#allocation7 + $0xf4] sm:$0xf]
    %v558 = vld [vmem:[#allocation7 + $0xf8] sm:$0xf]
    %v559 = vld [vmem:[#allocation7 + $0xfc] sm:$0xf]
    %v560 = vld [vmem:[#allocation7 + $0x100] sm:$0xf]
    %v561 = vld [vmem:[#allocation7 + $0x104] sm:$0xf]
    %v562 = vld [vmem:[#allocation7 + $0x108] sm:$0xf]
    %v563 = vld [vmem:[#allocation7 + $0x10c] sm:$0xf]
    %v564 = vld [vmem:[#allocation7 + $0x110] sm:$0xf]
    %v565 = vld [vmem:[#allocation7 + $0x114] sm:$0xf]
    %v566 = vld [vmem:[#allocation7 + $0x118] sm:$0xf]
    %v567 = vld [vmem:[#allocation7 + $0x11c] sm:$0xf]
    %v568 = vld [vmem:[#allocation7 + $0x120] sm:$0xf]
    %v569 = vld [vmem:[#allocation7 + $0x124] sm:$0xf]
    %v570 = vld [vmem:[#allocation7 + $0x128] sm:$0xf]
    %v571 = vld [vmem:[#allocation7 + $0x12c] sm:$0xf]
    %v572 = vld [vmem:[#allocation7 + $0x130] sm:$0xf]
    %v573 = vld [vmem:[#allocation7 + $0x134] sm:$0xf]
    %v574 = vld [vmem:[#allocation7 + $0x138] sm:$0xf]
    %v575 = vld [vmem:[#allocation7 + $0x13c] sm:$0xf]
    %v576 = vld [vmem:[#allocation7 + $0x140] sm:$0xf]
    %v577 = vld [vmem:[#allocation7 + $0x144] sm:$0xf]
    %v578 = vld [vmem:[#allocation7 + $0x148] sm:$0xf]
    %v579 = vld [vmem:[#allocation7 + $0x14c] sm:$0xf]
    %v580 = vld [vmem:[#allocation7 + $0x150] sm:$0xf]
    %v581 = vld [vmem:[#allocation7 + $0x154] sm:$0xf]
    %v582 = vld [vmem:[#allocation7 + $0x158] sm:$0xf]
    %v583 = vld [vmem:[#allocation7 + $0x15c] sm:$0xf]
    %v584 = vld [vmem:[#allocation7 + $0x160] sm:$0xf]
    %v585 = vld [vmem:[#allocation7 + $0x164] sm:$0xf]
    %v586 = vld [vmem:[#allocation7 + $0x168] sm:$0xf]
    %v587 = vld [vmem:[#allocation7 + $0x16c] sm:$0xf]
    %v588 = vld [vmem:[#allocation7 + $0x170] sm:$0xf]
    %v589 = vld [vmem:[#allocation7 + $0x174] sm:$0xf]
    %v590 = vld [vmem:[#allocation7 + $0x178] sm:$0xf]
    %v591 = vld [vmem:[#allocation7 + $0x17c] sm:$0xf]
    %v592 = vld [vmem:[#allocation7 + $0x180] sm:$0xf]
    %v593 = vld [vmem:[#allocation7 + $0x184] sm:$0xf]
    %v594 = vld [vmem:[#allocation7 + $0x188] sm:$0xf]
    %v595 = vld [vmem:[#allocation7 + $0x18c] sm:$0xf]
    %v596 = vld [vmem:[#allocation7 + $0x190] sm:$0xf]
    %v597 = vld [vmem:[#allocation7 + $0x194] sm:$0xf]
    %v598 = vld [vmem:[#allocation7 + $0x198] sm:$0xf]
    %v599 = vld [vmem:[#allocation7 + $0x19c] sm:$0xf]
    %v600 = vld [vmem:[%s4] sm:$0x1]
    %v602 = vlaneseq
    %v603 = vshrl.u32 %v602, 7
    %v604 = vsub.s32 0, %v603
    %v605 = vrot.slane %v600, %v604
    %v711 = vunpack.c.l.b16 %v496
    %v712 = vunpack.c.l.b16 %v497
    %v713 = vunpack.c.l.b16 %v498
    %v714 = vunpack.c.l.b16 %v499
    %v715 = vunpack.c.l.b16 %v500
    %v716 = vunpack.c.l.b16 %v501
    %v717 = vunpack.c.l.b16 %v502
    %v718 = vunpack.c.l.b16 %v503
    %v719 = vunpack.c.l.b16 %v504
    %v720 = vunpack.c.l.b16 %v505
    %v721 = vunpack.c.l.b16 %v506
    %v722 = vunpack.c.l.b16 %v507
    %v723 = vunpack.c.l.b16 %v508
    %v724 = vunpack.c.l.b16 %v509
    %v725 = vunpack.c.l.b16 %v510
    %v726 = vunpack.c.l.b16 %v511
    %v727 = vunpack.c.l.b16 %v512
    %v728 = vunpack.c.l.b16 %v513
    %v729 = vunpack.c.l.b16 %v514
    %v730 = vunpack.c.l.b16 %v515
    %v731 = vunpack.c.l.b16 %v516
    %v732 = vunpack.c.l.b16 %v517
    %v733 = vunpack.c.l.b16 %v518
    %v734 = vunpack.c.l.b16 %v519
    %v735 = vunpack.c.l.b16 %v520
    %v736 = vunpack.c.l.b16 %v521
    %v737 = vunpack.c.l.b16 %v522
    %v738 = vunpack.c.l.b16 %v523
    %v739 = vunpack.c.l.b16 %v524
    %v740 = vunpack.c.l.b16 %v525
    %v741 = vunpack.c.l.b16 %v526
    %v742 = vunpack.c.l.b16 %v527
    %v743 = vunpack.c.l.b16 %v528
    %v744 = vunpack.c.l.b16 %v529
    %v745 = vunpack.c.l.b16 %v530
    %v746 = vunpack.c.l.b16 %v531
    %v747 = vunpack.c.l.b16 %v532
    %v748 = vunpack.c.l.b16 %v533
    %v749 = vunpack.c.l.b16 %v534
    %v750 = vunpack.c.l.b16 %v535
    %v751 = vunpack.c.l.b16 %v536
    %v752 = vunpack.c.l.b16 %v537
    %v753 = vunpack.c.l.b16 %v538
    %v754 = vunpack.c.l.b16 %v539
    %v755 = vunpack.c.l.b16 %v540
    %v756 = vunpack.c.l.b16 %v541
    %v757 = vunpack.c.l.b16 %v542
    %v758 = vunpack.c.l.b16 %v543
    %v759 = vunpack.c.l.b16 %v544
    %v760 = vunpack.c.l.b16 %v545
    %v761 = vunpack.c.l.b16 %v546
    %v762 = vunpack.c.l.b16 %v547
    %v763 = vunpack.c.l.b16 %v548
    %v764 = vunpack.c.l.b16 %v549
    %v765 = vunpack.c.l.b16 %v550
    %v766 = vunpack.c.l.b16 %v551
    %v767 = vunpack.c.l.b16 %v552
    %v768 = vunpack.c.l.b16 %v553
    %v769 = vunpack.c.l.b16 %v554
    %v770 = vunpack.c.l.b16 %v555
    %v771 = vunpack.c.l.b16 %v556
    %v772 = vunpack.c.l.b16 %v557
    %v773 = vunpack.c.l.b16 %v558
    %v774 = vunpack.c.l.b16 %v559
    %v775 = vunpack.c.l.b16 %v560
    %v776 = vunpack.c.l.b16 %v561
    %v777 = vunpack.c.l.b16 %v562
    %v778 = vunpack.c.l.b16 %v563
    %v779 = vunpack.c.l.b16 %v564
    %v780 = vunpack.c.l.b16 %v565
    %v781 = vunpack.c.l.b16 %v566
    %v782 = vunpack.c.l.b16 %v567
    %v783 = vunpack.c.l.b16 %v568
    %v784 = vunpack.c.l.b16 %v569
    %v785 = vunpack.c.l.b16 %v570
    %v786 = vunpack.c.l.b16 %v571
    %v787 = vunpack.c.l.b16 %v572
    %v788 = vunpack.c.l.b16 %v573
    %v789 = vunpack.c.l.b16 %v574
    %v790 = vunpack.c.l.b16 %v575
    %v791 = vunpack.c.l.b16 %v576
    %v792 = vunpack.c.l.b16 %v577
    %v793 = vunpack.c.l.b16 %v578
    %v794 = vunpack.c.l.b16 %v579
    %v795 = vunpack.c.l.b16 %v580
    %v796 = vunpack.c.l.b16 %v581
    %v797 = vunpack.c.l.b16 %v582
    %v798 = vunpack.c.l.b16 %v583
    %v799 = vunpack.c.l.b16 %v584
    %v800 = vunpack.c.l.b16 %v585
    %v801 = vunpack.c.l.b16 %v586
    %v802 = vunpack.c.l.b16 %v587
    %v803 = vunpack.c.l.b16 %v588
    %v804 = vunpack.c.l.b16 %v589
    %v805 = vunpack.c.l.b16 %v590
    %v806 = vunpack.c.l.b16 %v591
    %v807 = vunpack.c.l.b16 %v592
    %v808 = vunpack.c.l.b16 %v593
    %v809 = vunpack.c.l.b16 %v594
    %v810 = vunpack.c.l.b16 %v595
    %v811 = vunpack.c.l.b16 %v596
    %v812 = vunpack.c.l.b16 %v597
    %v813 = vunpack.c.l.b16 %v598
    %v814 = vunpack.c.l.b16 %v599
    %v815 = vpack.c.b16 %v712, %v711
    %v816 = vpack.c.b16 %v714, %v713
    %v817 = vpack.c.b16 %v716, %v715
    %v818 = vpack.c.b16 %v718, %v717
    %v819 = vpack.c.b16 %v720, %v719
    %v820 = vpack.c.b16 %v722, %v721
    %v821 = vpack.c.b16 %v724, %v723
    %v822 = vpack.c.b16 %v726, %v725
    %v823 = vpack.c.b16 %v728, %v727
    %v824 = vpack.c.b16 %v730, %v729
    %v825 = vpack.c.b16 %v732, %v731
    %v826 = vpack.c.b16 %v734, %v733
    %v827 = vpack.c.b16 %v736, %v735
    %v828 = vpack.c.b16 %v738, %v737
    %v829 = vpack.c.b16 %v740, %v739
    %v830 = vpack.c.b16 %v742, %v741
    %v831 = vpack.c.b16 %v744, %v743
    %v832 = vpack.c.b16 %v746, %v745
    %v833 = vpack.c.b16 %v748, %v747
    %v834 = vpack.c.b16 %v750, %v749
    %v835 = vpack.c.b16 %v752, %v751
    %v836 = vpack.c.b16 %v754, %v753
    %v837 = vpack.c.b16 %v756, %v755
    %v838 = vpack.c.b16 %v758, %v757
    %v839 = vpack.c.b16 %v760, %v759
    %v840 = vpack.c.b16 %v762, %v761
    %v841 = vpack.c.b16 %v764, %v763
    %v842 = vpack.c.b16 %v766, %v765
    %v843 = vpack.c.b16 %v768, %v767
    %v844 = vpack.c.b16 %v770, %v769
    %v845 = vpack.c.b16 %v772, %v771
    %v846 = vpack.c.b16 %v774, %v773
    %v847 = vpack.c.b16 %v776, %v775
    %v848 = vpack.c.b16 %v778, %v777
    %v849 = vpack.c.b16 %v780, %v779
    %v850 = vpack.c.b16 %v782, %v781
    %v851 = vpack.c.b16 %v784, %v783
    %v852 = vpack.c.b16 %v786, %v785
    %v853 = vpack.c.b16 %v788, %v787
    %v854 = vpack.c.b16 %v790, %v789
    %v855 = vpack.c.b16 %v792, %v791
    %v856 = vpack.c.b16 %v794, %v793
    %v857 = vpack.c.b16 %v796, %v795
    %v858 = vpack.c.b16 %v798, %v797
    %v859 = vpack.c.b16 %v800, %v799
    %v860 = vpack.c.b16 %v802, %v801
    %v861 = vpack.c.b16 %v804, %v803
    %v862 = vpack.c.b16 %v806, %v805
    %v863 = vpack.c.b16 %v808, %v807
    %v864 = vpack.c.b16 %v810, %v809
    %v865 = vpack.c.b16 %v812, %v811
    %v866 = vpack.c.b16 %v814, %v813
    %v920 = vsel %vm194, %v494, 0
    %v923 = vsel %vm194, %v495, 0
    %925 = vmatprep.subr.bf16.mxu0 0
    %926 = vmatpush1.bf16.msra.mxu0 %v815
    %927 = vmatprep.subr.bf16.mxu0 0
    %928 = vmatpush1.bf16.msra.mxu0 %v816
    %929 = vmatprep.subr.bf16.mxu0 0
    %930 = vmatpush1.bf16.msra.mxu0 %v817
    %931 = vmatprep.subr.bf16.mxu0 0
    %932 = vmatpush1.bf16.msra.mxu0 %v818
    %933 = vmatprep.subr.bf16.mxu0 0
    %934 = vmatpush1.bf16.msra.mxu0 %v819
    %935 = vmatprep.subr.bf16.mxu0 0
    %936 = vmatpush1.bf16.msra.mxu0 %v820
    %937 = vmatprep.subr.bf16.mxu0 0
    %938 = vmatpush1.bf16.msra.mxu0 %v821
    %939 = vmatprep.subr.bf16.mxu0 0
    %940 = vmatpush1.bf16.msra.mxu0 %v822
    %941 = vmatprep.subr.bf16.mxu0 0
    %942 = vmatpush1.bf16.msra.mxu0 %v823
    %943 = vmatprep.subr.bf16.mxu0 0
    %944 = vmatpush1.bf16.msra.mxu0 %v824
    %945 = vmatprep.subr.bf16.mxu0 0
    %946 = vmatpush1.bf16.msra.mxu0 %v825
    %947 = vmatprep.subr.bf16.mxu0 0
    %948 = vmatpush1.bf16.msra.mxu0 %v826
    %949 = vmatprep.subr.bf16.mxu0 0
    %950 = vmatpush1.bf16.msra.mxu0 %v827
    %951 = vmatprep.subr.bf16.mxu0 0
    %952 = vmatpush1.bf16.msra.mxu0 %v828
    %953 = vmatprep.subr.bf16.mxu0 0
    %954 = vmatpush1.bf16.msra.mxu0 %v829
    %955 = vmatprep.subr.bf16.mxu0 0
    %956 = vmatpush1.bf16.msra.mxu0 %v830
    %957 = vmatprep.mubr.bf16.mxu0 %v475
    %958 = vmatmul.mubr.bf16.gmra.mrb[0].mxu0 %v474
    %v959 = vpop.f32.mrb[0].mxu0
    %v960 = vadd.f32 %v605, %v959
    %v961 = vpop.f32.mrb[0].mxu0
    %v962 = vpop.f32.mrb[0].mxu0
    %v963 = vadd.f32 %v605, %v962
    %v964 = vpop.f32.mrb[0].mxu0
    %965 = vmatprep.mubr.bf16.mxu0 %v481
    %966 = vmatmul.mubr.bf16.gmra.mrb[0].mxu0 %v480
    %v967 = vpop.f32.mrb[0].mxu0
    %v968 = vadd.f32 %v605, %v967
    %v969 = vpop.f32.mrb[0].mxu0
    %v970 = vpop.f32.mrb[0].mxu0
    %v971 = vadd.f32 %v605, %v970
    %v972 = vpop.f32.mrb[0].mxu0
    %973 = vdwg.mxu0
    %974 = vmatprep.subr.bf16.mxu0 0
    %975 = vmatpush1.bf16.msra.mxu0 %v831
    %976 = vmatprep.subr.bf16.mxu0 0
    %977 = vmatpush1.bf16.msra.mxu0 %v832
    %978 = vmatprep.subr.bf16.mxu0 0
    %979 = vmatpush1.bf16.msra.mxu0 %v833
    %980 = vmatprep.subr.bf16.mxu0 0
    %981 = vmatpush1.bf16.msra.mxu0 %v834
    %982 = vmatprep.subr.bf16.mxu0 0
    %983 = vmatpush1.bf16.msra.mxu0 %v835
    %984 = vmatprep.subr.bf16.mxu0 0
    %985 = vmatpush1.bf16.msra.mxu0 %v836
    %986 = vmatprep.subr.bf16.mxu0 0
    %987 = vmatpush1.bf16.msra.mxu0 %v837
    %988 = vmatprep.subr.bf16.mxu0 0
    %989 = vmatpush1.bf16.msra.mxu0 %v838
    %990 = vmatprep.subr.bf16.mxu0 0
    %991 = vmatpush1.bf16.msra.mxu0 %v839
    %992 = vmatprep.subr.bf16.mxu0 0
    %993 = vmatpush1.bf16.msra.mxu0 %v840
    %994 = vmatprep.subr.bf16.mxu0 0
    %995 = vmatpush1.bf16.msra.mxu0 %v841
    %996 = vmatprep.subr.bf16.mxu0 0
    %997 = vmatpush1.bf16.msra.mxu0 %v842
    %998 = vmatprep.subr.bf16.mxu0 0
    %999 = vmatpush1.bf16.msra.mxu0 %v843
    %1000 = vmatprep.subr.bf16.mxu0 0
    %1001 = vmatpush1.bf16.msra.mxu0 %v844
    %1002 = vmatprep.subr.bf16.mxu0 0
    %1003 = vmatpush1.bf16.msra.mxu0 %v845
    %1004 = vmatprep.subr.bf16.mxu0 0
    %1005 = vmatpush1.bf16.msra.mxu0 %v846
    %1006 = vmatprep.mubr.bf16.mxu0 %v477
    %1007 = vmatmul.mubr.bf16.gmra.mrb[0].mxu0 %v476
    %v1008 = vpop.f32.mrb[0].mxu0
    %v1009 = vadd.f32 %v960, %v1008
    %v1010 = vpop.f32.mrb[0].mxu0
    %v1011 = vpop.f32.mrb[0].mxu0
    %v1012 = vadd.f32 %v963, %v1011
    %v1013 = vpop.f32.mrb[0].mxu0
    %1014 = vmatprep.mubr.bf16.mxu0 %v483
    %1015 = vmatmul.mubr.bf16.gmra.mrb[0].mxu0 %v482
    %v1016 = vpop.f32.mrb[0].mxu0
    %v1017 = vadd.f32 %v968, %v1016
    %v1018 = vpop.f32.mrb[0].mxu0
    %v1019 = vpop.f32.mrb[0].mxu0
    %v1020 = vadd.f32 %v971, %v1019
    %v1021 = vpop.f32.mrb[0].mxu0
    %1022 = vdwg.mxu0
    %1023 = vmatprep.subr.bf16.mxu0 0
    %1024 = vmatpush1.bf16.msra.mxu0 %v847
    %1025 = vmatprep.subr.bf16.mxu0 0
    %1026 = vmatpush1.bf16.msra.mxu0 %v848
    %1027 = vmatprep.subr.bf16.mxu0 0
    %1028 = vmatpush1.bf16.msra.mxu0 %v849
    %1029 = vmatprep.subr.bf16.mxu0 0
    %1030 = vmatpush1.bf16.msra.mxu0 %v850
    %1031 = vmatprep.subr.bf16.mxu0 0
    %1032 = vmatpush1.bf16.msra.mxu0 %v851
    %1033 = vmatprep.subr.bf16.mxu0 0
    %1034 = vmatpush1.bf16.msra.mxu0 %v852
    %1035 = vmatprep.subr.bf16.mxu0 0
    %1036 = vmatpush1.bf16.msra.mxu0 %v853
    %1037 = vmatprep.subr.bf16.mxu0 0
    %1038 = vmatpush1.bf16.msra.mxu0 %v854
    %1039 = vmatprep.subr.bf16.mxu0 0
    %1040 = vmatpush1.bf16.msra.mxu0 %v855
    %1041 = vmatprep.subr.bf16.mxu0 0
    %1042 = vmatpush1.bf16.msra.mxu0 %v856
    %1043 = vmatprep.subr.bf16.mxu0 0
    %1044 = vmatpush1.bf16.msra.mxu0 %v857
    %1045 = vmatprep.subr.bf16.mxu0 0
    %1046 = vmatpush1.bf16.msra.mxu0 %v858
    %1047 = vmatprep.subr.bf16.mxu0 0
    %1048 = vmatpush1.bf16.msra.mxu0 %v859
    %1049 = vmatprep.subr.bf16.mxu0 0
    %1050 = vmatpush1.bf16.msra.mxu0 %v860
    %1051 = vmatprep.subr.bf16.mxu0 0
    %1052 = vmatpush1.bf16.msra.mxu0 %v861
    %1053 = vmatprep.subr.bf16.mxu0 0
    %1054 = vmatpush1.bf16.msra.mxu0 %v862
    %1055 = vmatprep.mubr.bf16.mxu0 %v479
    %1056 = vmatmul.mubr.bf16.gmra.mrb[0].mxu0 %v478
    %v1057 = vpop.f32.mrb[0].mxu0
    %v1058 = vadd.f32 %v1009, %v1057
    %v1059 = vpop.f32.mrb[0].mxu0
    %v1060 = vpop.f32.mrb[0].mxu0
    %v1061 = vadd.f32 %v1012, %v1060
    %v1062 = vpop.f32.mrb[0].mxu0
    %1063 = vmatprep.mubr.bf16.mxu0 %v485
    %1064 = vmatmul.mubr.bf16.gmra.mrb[0].mxu0 %v484
    %v1065 = vpop.f32.mrb[0].mxu0
    %v1066 = vadd.f32 %v1017, %v1065
    %v1067 = vpop.f32.mrb[0].mxu0
    %v1068 = vpop.f32.mrb[0].mxu0
    %v1069 = vadd.f32 %v1020, %v1068
    %v1070 = vpop.f32.mrb[0].mxu0
    %1071 = vdwg.mxu0
    %1072 = vmatprep.subr.bf16.mxu0 0
    %1073 = vmatpush1.bf16.msra.mxu0 %v863
    %1074 = vmatprep.subr.bf16.mxu0 0
    %1075 = vmatpush1.bf16.msra.mxu0 %v864
    %1076 = vmatprep.subr.bf16.mxu0 0
    %1077 = vmatpush1.bf16.msra.mxu0 %v865
    %1078 = vmatprep.subr.bf16.mxu0 0
    %1079 = vmatpush1.bf16.msra.mxu0 %v866
    %1080 = vmatprep.subr.bf16.mxu0 0
    %1081 = vmatpush1.bf16.msra.mxu0 0
    %1082 = vmatprep.subr.bf16.mxu0 0
    %1083 = vmatpush1.bf16.msra.mxu0 0
    %1084 = vmatprep.subr.bf16.mxu0 0
    %1085 = vmatpush1.bf16.msra.mxu0 0
    %1086 = vmatprep.subr.bf16.mxu0 0
    %1087 = vmatpush1.bf16.msra.mxu0 0
    %1088 = vmatprep.subr.bf16.mxu0 0
    %1089 = vmatpush1.bf16.msra.mxu0 0
    %1090 = vmatprep.subr.bf16.mxu0 0
    %1091 = vmatpush1.bf16.msra.mxu0 0
    %1092 = vmatprep.subr.bf16.mxu0 0
    %1093 = vmatpush1.bf16.msra.mxu0 0
    %1094 = vmatprep.subr.bf16.mxu0 0
    %1095 = vmatpush1.bf16.msra.mxu0 0
    %1096 = vmatprep.subr.bf16.mxu0 0
    %1097 = vmatpush1.bf16.msra.mxu0 0
    %1098 = vmatprep.subr.bf16.mxu0 0
    %1099 = vmatpush1.bf16.msra.mxu0 0
    %1100 = vmatprep.subr.bf16.mxu0 0
    %1101 = vmatpush1.bf16.msra.mxu0 0
    %1102 = vmatprep.subr.bf16.mxu0 0
    %1103 = vmatpush1.bf16.msra.mxu0 0
    %1104 = vmatprep.mubr.bf16.mxu0 0
    %1105 = vmatmul.mubr.bf16.gmra.mrb[0].mxu0 %v920
    %v1106 = vpop.f32.mrb[0].mxu0
    %v1107 = vadd.f32 %v1058, %v1106
    %v1108 = vpop.f32.mrb[0].mxu0
    %v1109 = vpop.f32.mrb[0].mxu0
    %v1110 = vadd.f32 %v1061, %v1109
    %v1111 = vpop.f32.mrb[0].mxu0
    %1112 = vmatprep.mubr.bf16.mxu0 0
    %1113 = vmatmul.mubr.bf16.gmra.mrb[0].mxu0 %v923
    %v1114 = vpop.f32.mrb[0].mxu0
    %v1115 = vadd.f32 %v1066, %v1114
    %v1116 = vpop.f32.mrb[0].mxu0
    %v1117 = vpop.f32.mrb[0].mxu0
    %v1118 = vadd.f32 %v1069, %v1117
    %v1119 = vpop.f32.mrb[0].mxu0
    %1120 = vdwg.mxu0
    %1121 = vst [vmem:[#allocation8] sm:$0xff] %v1107
    %1122 = vst [vmem:[#allocation8 + $0x8] sm:$0xff] %v1110
    %1123 = vst [vmem:[#allocation8 + $0x10] sm:$0xff] %v1115
    %1124 = vst [vmem:[#allocation8 + $0x18] sm:$0xff] %v1118
    // Predicated region
    $region34: #{tpu_custom_call.1} parent=1 // pred_check
      _
    $region35: #{tpu_custom_call.1} parent=1 // pred_check_branch
      %1126 = sbr.rel (0) target = $region37
    $region36: #{tpu_custom_call.1} parent=1 // pred_region
      %s1128 = ssub.s32 512, 512
      %1129 = vsyncadd [#allocation4], %s1128
      %s1130 = sshll.u32 [#allocation8], 4
      %s1131 = int_to_ptr.vmem [resolvable:$true] %s1130
      %1136 = dma.vmem_to_hbm [thread:$0]  %s1131, 512, %s5, [#allocation4], 128, 128, 8
    $region37: #{tpu_custom_call.1} parent=1 // pred_fallthru
      _
    // Predicated region
    $region38: #{tpu_custom_call.1} parent=1 // pred_check
      _
    $region39: #{tpu_custom_call.1} parent=1 // pred_check_branch
      %1138 = sbr.rel (0) target = $region41
    $region40: #{tpu_custom_call.1} parent=1 // pred_region
      %1139 = dma.done [#allocation4], 512
    $region41: #{tpu_custom_call.1} parent=1 // pred_fallthru
      _
    %1140 = vsyncpa [#allocation3], 1
    %1141 = vsyncpa [#allocation6], 1
    %1142 = vsyncpa [#allocation4], 1

</llo_original>
